<compile_context>
chip_gen: v7x
topology: tpu7x:2x2x1
jax: 0.10.0
libtpu: 0.0.40
codegen_flags: <defaults>
</compile_context>

<pallas_src>
import functools

import jax
import jax.numpy as jnp
from jax.experimental import pallas as pl
from jax.experimental.pallas import tpu as pltpu

HIDDEN = 64
ROW_ALIGN = 8  # f32 sublane packing: keep row tiles multiples of 8


def dqn_kernel(x_ref, w1_ref, b1_ref, w2_ref, b2_ref, w3_ref, b3_ref, o_ref):
    # fc1 + ReLU (f32 MXU accumulate; bias/ReLU on VPU)
    h = jnp.dot(x_ref[...], w1_ref[...], preferred_element_type=jnp.float32)
    h = jnp.maximum(h + b1_ref[...], 0.0)
    # fc2 + ReLU
    h = jnp.dot(h, w2_ref[...], preferred_element_type=jnp.float32)
    h = jnp.maximum(h + b2_ref[...], 0.0)
    # fc4 + ReLU (output block is (tb, a_num); masked vst in VMEM is fine —
    # the HBM array is only a_num columns wide so writeback stays compact)
    h = jnp.dot(h, w3_ref[...], preferred_element_type=jnp.float32)
    o_ref[...] = jnp.maximum(h + b3_ref[...], 0.0).astype(o_ref.dtype)


def _round_up(n, m):
    return ((n + m - 1) // m) * m


def _batch_axis_semantics(num_blocks):
    # CORE_PARALLEL is what actually shards a grid axis across v7x's two
    # TensorCores; v5e/v6e have a single TC, so PARALLEL is used there.
    try:
        kind = jax.devices()[0].device_kind.lower()
    except Exception:  # pragma: no cover - defensive (e.g. odd backends)
        kind = ""
    if "v7" in kind and num_blocks >= 2:
        return (pltpu.CORE_PARALLEL,)
    return (pltpu.PARALLEL,)


@functools.partial(jax.jit, static_argnames=("tb",))
def dqn_forward(x, params, *, tb=2048):
    """x: (B, s_dim) float32.  params: dict w1,b1,w2,b2,w3,b3 stored as (in, out)."""
    B, s_dim = x.shape
    a_num = params["w3"].shape[1]

    # Row tile: large enough to amortize per-grid-step overhead, capped at the
    # (row-aligned) batch so small action-selection batches stay single-step.
    tb = max(ROW_ALIGN, min(_round_up(tb, ROW_ALIGN), _round_up(B, ROW_ALIGN)))
    num_blocks = pl.cdiv(B, tb)  # ragged last block: Pallas masks the writeback

    const = lambda i: (0, 0)

    flops = 2 * B * (s_dim * HIDDEN + HIDDEN * HIDDEN + HIDDEN * a_num)
    bytes_accessed = 4 * (
        B * s_dim + B * a_num
        + s_dim * HIDDEN + HIDDEN * HIDDEN + HIDDEN * a_num
        + 2 * HIDDEN + a_num
    )

    out = pl.pallas_call(
        dqn_kernel,
        out_shape=jax.ShapeDtypeStruct((B, a_num), jnp.float32),
        grid=(num_blocks,),
        in_specs=[
            pl.BlockSpec((tb, s_dim), lambda i: (i, 0)),   # x tile (pipelined)
            pl.BlockSpec((s_dim, HIDDEN), const),          # w1 (VMEM-resident)
            pl.BlockSpec((1, HIDDEN), const),              # b1
            pl.BlockSpec((HIDDEN, HIDDEN), const),         # w2
            pl.BlockSpec((1, HIDDEN), const),              # b2
            pl.BlockSpec((HIDDEN, a_num), const),          # w3 (block == full dims)
            pl.BlockSpec((1, a_num), const),               # b3
        ],
        out_specs=pl.BlockSpec((tb, a_num), lambda i: (i, 0)),
        compiler_params=pltpu.CompilerParams(
            dimension_semantics=_batch_axis_semantics(num_blocks),
        ),
        cost_estimate=pl.CostEstimate(
            flops=flops, transcendentals=0, bytes_accessed=bytes_accessed),
    )(x, params["w1"], params["b1"], params["w2"], params["b2"],
      params["w3"], params["b3"])

    return out


def init_params(key, s_dim, a_num):
    """Deterministic init matching nn.Linear + kaiming_normal_(mode='fan_in')."""
    ks = jax.random.split(key, 6)

    def kaiming_normal(k, fan_in, fan_out):
        # gain = sqrt(2) for default leaky_relu(a=0); std = gain / sqrt(fan_in)
        std = jnp.sqrt(2.0 / fan_in)
        # stored as (in, out) so forward is x @ W
        return jax.random.normal(k, (fan_in, fan_out), dtype=jnp.float32) * std

    def bias_init(k, fan_in, fan_out):
        bound = 1.0 / jnp.sqrt(fan_in)
        return jax.random.uniform(k, (1, fan_out), dtype=jnp.float32,
                                  minval=-bound, maxval=bound)

    return {
        "w1": kaiming_normal(ks[0], s_dim, HIDDEN),
        "b1": bias_init(ks[1], s_dim, HIDDEN),
        "w2": kaiming_normal(ks[2], HIDDEN, HIDDEN),
        "b2": bias_init(ks[3], HIDDEN, HIDDEN),
        "w3": kaiming_normal(ks[4], HIDDEN, a_num),
        "b3": bias_init(ks[5], HIDDEN, a_num),
    }


def dqn_reference(x, p):
    """Pure-JAX f32 reference (matches the PyTorch forward)."""
    h = jnp.maximum(jnp.dot(x, p["w1"]) + p["b1"], 0.0)
    h = jnp.maximum(jnp.dot(h, p["w2"]) + p["b2"], 0.0)
    return jnp.maximum(jnp.dot(h, p["w3"]) + p["b3"], 0.0)


if __name__ == "__main__":
    key = jax.random.PRNGKey(0)
    k_param, k_x1, k_x2 = jax.random.split(key, 3)

    s_dim, a_num = 16, 4
    params = init_params(k_param, s_dim, a_num)

    # Small batch (per-step action-selection style path): single grid step.
    x_small = jax.random.normal(k_x1, (8, s_dim), dtype=jnp.float32)
    out_small = jax.block_until_ready(dqn_forward(x_small, params))
    ref_small = dqn_reference(x_small, params)
    assert out_small.shape == (8, a_num), out_small.shape
    assert jnp.allclose(out_small, ref_small, atol=1e-2, rtol=1e-2), \
        "small-batch mismatch vs JAX reference"

    # Larger, non-multiple-of-tile batch: exercises the batch grid and the
    # ragged (masked) final block — no explicit padding or slicing anywhere.
    x_big = jax.random.normal(k_x2, (260, s_dim), dtype=jnp.float32)
    out_big = jax.block_until_ready(dqn_forward(x_big, params, tb=128))
    ref_big = dqn_reference(x_big, params)
    assert out_big.shape == (260, a_num), out_big.shape
    assert jnp.allclose(out_big, ref_big, atol=1e-2, rtol=1e-2), \
        "tiled-batch mismatch vs JAX reference"

    print("KERNEL_OK")
</pallas_src>

<mosaic_0001>
module attributes {stable_mosaic.version = 11 : i64} {
  func.func @dqn_kernel(%arg0: i32, %arg1: memref<8x16xf32, #tpu.memory_space<vmem>>, %arg2: memref<16x64xf32, #tpu.memory_space<vmem>>, %arg3: memref<1x64xf32, #tpu.memory_space<vmem>>, %arg4: memref<64x64xf32, #tpu.memory_space<vmem>>, %arg5: memref<1x64xf32, #tpu.memory_space<vmem>>, %arg6: memref<64x4xf32, #tpu.memory_space<vmem>>, %arg7: memref<1x4xf32, #tpu.memory_space<vmem>>, %arg8: memref<8x4xf32, #tpu.memory_space<vmem>>) attributes {dimension_semantics = [#tpu.dimension_semantics<parallel>], iteration_bounds = array<i64: 1>, scalar_prefetch = 0 : i64, scratch_operands = 0 : i64, tpu.core_type = #tpu.core_type<tc>, window_params = [{transform_indices = @transform_0, window_bounds = array<i64: 8, 16>}, {pipeline_mode = #tpu.pipeline_mode<synchronous>, transform_indices = @transform_1, window_bounds = array<i64: 16, 64>}, {pipeline_mode = #tpu.pipeline_mode<synchronous>, transform_indices = @transform_2, window_bounds = array<i64: 1, 64>}, {pipeline_mode = #tpu.pipeline_mode<synchronous>, transform_indices = @transform_3, window_bounds = array<i64: 64, 64>}, {pipeline_mode = #tpu.pipeline_mode<synchronous>, transform_indices = @transform_4, window_bounds = array<i64: 1, 64>}, {pipeline_mode = #tpu.pipeline_mode<synchronous>, transform_indices = @transform_5, window_bounds = array<i64: 64, 4>}, {pipeline_mode = #tpu.pipeline_mode<synchronous>, transform_indices = @transform_6, window_bounds = array<i64: 1, 4>}, {transform_indices = @transform_7, window_bounds = array<i64: 8, 4>}]} {
    %c0 = arith.constant 0 : index
    %c0_0 = arith.constant 0 : index
    %0 = vector.load %arg1[%c0, %c0_0] : memref<8x16xf32, #tpu.memory_space<vmem>>, vector<8x16xf32>
    %c0_1 = arith.constant 0 : index
    %c0_2 = arith.constant 0 : index
    %1 = vector.load %arg2[%c0_1, %c0_2] : memref<16x64xf32, #tpu.memory_space<vmem>>, vector<16x64xf32>
    %cst = arith.constant dense<0.000000e+00> : vector<8x64xf32>
    %2 = tpu.matmul %0, %1, %cst {dimension_numbers = #tpu.dot_dimension_numbers<[1], [0], [0], [1], [0, 0, 1, 1], [], []>} : vector<8x16xf32>, vector<16x64xf32>, vector<8x64xf32> -> vector<8x64xf32>
    %c0_3 = arith.constant 0 : index
    %c0_4 = arith.constant 0 : index
    %3 = vector.load %arg3[%c0_3, %c0_4] : memref<1x64xf32, #tpu.memory_space<vmem>>, vector<1x64xf32>
    %4 = vector.broadcast %3 : vector<1x64xf32> to vector<8x64xf32>
    %5 = arith.addf %2, %4 : vector<8x64xf32>
    %cst_5 = arith.constant 0.000000e+00 : f32
    %6 = vector.broadcast %cst_5 : f32 to vector<8x64xf32>
    %7 = arith.maximumf %5, %6 : vector<8x64xf32>
    %c0_6 = arith.constant 0 : index
    %c0_7 = arith.constant 0 : index
    %8 = vector.load %arg4[%c0_6, %c0_7] : memref<64x64xf32, #tpu.memory_space<vmem>>, vector<64x64xf32>
    %cst_8 = arith.constant dense<0.000000e+00> : vector<8x64xf32>
    %9 = tpu.matmul %7, %8, %cst_8 {dimension_numbers = #tpu.dot_dimension_numbers<[1], [0], [0], [1], [0, 0, 1, 1], [], []>} : vector<8x64xf32>, vector<64x64xf32>, vector<8x64xf32> -> vector<8x64xf32>
    %c0_9 = arith.constant 0 : index
    %c0_10 = arith.constant 0 : index
    %10 = vector.load %arg5[%c0_9, %c0_10] : memref<1x64xf32, #tpu.memory_space<vmem>>, vector<1x64xf32>
    %11 = vector.broadcast %10 : vector<1x64xf32> to vector<8x64xf32>
    %12 = arith.addf %9, %11 : vector<8x64xf32>
    %cst_11 = arith.constant 0.000000e+00 : f32
    %13 = vector.broadcast %cst_11 : f32 to vector<8x64xf32>
    %14 = arith.maximumf %12, %13 : vector<8x64xf32>
    %c0_12 = arith.constant 0 : index
    %c0_13 = arith.constant 0 : index
    %15 = vector.load %arg6[%c0_12, %c0_13] : memref<64x4xf32, #tpu.memory_space<vmem>>, vector<64x4xf32>
    %cst_14 = arith.constant dense<0.000000e+00> : vector<8x4xf32>
    %16 = tpu.matmul %14, %15, %cst_14 {dimension_numbers = #tpu.dot_dimension_numbers<[1], [0], [0], [1], [0, 0, 1, 1], [], []>} : vector<8x64xf32>, vector<64x4xf32>, vector<8x4xf32> -> vector<8x4xf32>
    %c0_15 = arith.constant 0 : index
    %c0_16 = arith.constant 0 : index
    %17 = vector.load %arg7[%c0_15, %c0_16] : memref<1x4xf32, #tpu.memory_space<vmem>>, vector<1x4xf32>
    %18 = vector.broadcast %17 : vector<1x4xf32> to vector<8x4xf32>
    %19 = arith.addf %16, %18 : vector<8x4xf32>
    %cst_17 = arith.constant 0.000000e+00 : f32
    %20 = vector.broadcast %cst_17 : f32 to vector<8x4xf32>
    %21 = arith.maximumf %19, %20 : vector<8x4xf32>
    %c0_18 = arith.constant 0 : index
    %c0_19 = arith.constant 0 : index
    %22 = vector.load %arg8[%c0_18, %c0_19] : memref<8x4xf32, #tpu.memory_space<vmem>>, vector<8x4xf32>
    tpu.vector_store %arg8[%c0_18, %c0_19], %21 {strides = array<i32>} : memref<8x4xf32, #tpu.memory_space<vmem>>, vector<8x4xf32>,
    return
  }
  func.func @transform_0(%arg0: i32) -> (i32, i32) {
    %c0_i32 = arith.constant 0 : i32
    %c0_i32_0 = arith.constant 0 : i32
    return %arg0, %c0_i32 : i32, i32
  }
  func.func @transform_1(%arg0: i32) -> (i32, i32) {
    %c0_i32 = arith.constant 0 : i32
    %c0_i32_0 = arith.constant 0 : i32
    %c0_i32_1 = arith.constant 0 : i32
    return %c0_i32, %c0_i32_0 : i32, i32
  }
  func.func @transform_2(%arg0: i32) -> (i32, i32) {
    %c0_i32 = arith.constant 0 : i32
    %c0_i32_0 = arith.constant 0 : i32
    %c0_i32_1 = arith.constant 0 : i32
    return %c0_i32, %c0_i32_0 : i32, i32
  }
  func.func @transform_3(%arg0: i32) -> (i32, i32) {
    %c0_i32 = arith.constant 0 : i32
    %c0_i32_0 = arith.constant 0 : i32
    %c0_i32_1 = arith.constant 0 : i32
    return %c0_i32, %c0_i32_0 : i32, i32
  }
  func.func @transform_4(%arg0: i32) -> (i32, i32) {
    %c0_i32 = arith.constant 0 : i32
    %c0_i32_0 = arith.constant 0 : i32
    %c0_i32_1 = arith.constant 0 : i32
    return %c0_i32, %c0_i32_0 : i32, i32
  }
  func.func @transform_5(%arg0: i32) -> (i32, i32) {
    %c0_i32 = arith.constant 0 : i32
    %c0_i32_0 = arith.constant 0 : i32
    %c0_i32_1 = arith.constant 0 : i32
    return %c0_i32, %c0_i32_0 : i32, i32
  }
  func.func @transform_6(%arg0: i32) -> (i32, i32) {
    %c0_i32 = arith.constant 0 : i32
    %c0_i32_0 = arith.constant 0 : i32
    %c0_i32_1 = arith.constant 0 : i32
    return %c0_i32, %c0_i32_0 : i32, i32
  }
  func.func @transform_7(%arg0: i32) -> (i32, i32) {
    %c0_i32 = arith.constant 0 : i32
    %c0_i32_0 = arith.constant 0 : i32
    return %arg0, %c0_i32 : i32, i32
  }
}

</mosaic_0001>

<llo_original>
// kernel: dqn_forward.1
$region0: #{dqn_forward.1}
  #allocation0 [shape = 'u32[]', space=smem, size = 0x4, offset = 0x4, fixed_abs, tag = 'smem constant byte address 0x4 - core index']
  #allocation1 [shape = 'u32[144,128]{1,0:T(1,128)}', space=vmem, size = 0x12000, scoped, tag = 'internal scratch']
  %s0 = inlined_call_operand.hbm [shape: f32[8,16], index: 0, kind: input, shape index: {}]
  %s1 = inlined_call_operand.vmem [shape: f32[16,64], index: 1, kind: input, shape index: {}]
  %s2 = inlined_call_operand.vmem [shape: f32[1,64], index: 2, kind: input, shape index: {}]
  %s3 = inlined_call_operand.vmem [shape: f32[64,64], index: 3, kind: input, shape index: {}]
  %s4 = inlined_call_operand.vmem [shape: f32[1,64], index: 4, kind: input, shape index: {}]
  %s5 = inlined_call_operand.vmem [shape: f32[64,4], index: 5, kind: input, shape index: {}]
  %s6 = inlined_call_operand.vmem [shape: f32[1,4], index: 6, kind: input, shape index: {}]
  %s7 = inlined_call_operand.vmem [shape: f32[8,4], index: 7, kind: output, shape index: {}]
  %s8 = sld [smem:[#allocation0]]
  $region42: #{dqn_forward.1} parent=0
    _
  %s10 = ssub.s32 1, %s8
  %s11 = scalar_select 0, %s10, %s8
  $region1: #{dqn_forward.1} parent=0
    #allocation2 [shape = 'u8[4096]{0}', space=vmem, size = 0x1000, scoped, tag = 'input window, operand 0, single buffered']
    #allocation3 [shape = 's32[1]{0}', space=sflag, size = 0x4, scoped, tag = 'scoped memory for dqn_forward.1']
    %12 = vsyncpa [#allocation3], 0
    // Predicated region
    $region2: #{dqn_forward.1} parent=1 // pred_check
      _
    $region3: #{dqn_forward.1} parent=1 // pred_check_branch
      %14 = sbr.rel (0) target = $region5
    $region4: #{dqn_forward.1} parent=1 // pred_region
      %s16 = ssub.s32 128, 128
      %17 = vsyncadd [#allocation3], %s16
      %s19 = sshll.u32 [#allocation2], 4
      %s20 = int_to_ptr.vmem [resolvable:$true] %s19
      %22 = dma.hbm_to_vmem [thread:$0]  %s0, 128, %s20, [#allocation3]
    $region5: #{dqn_forward.1} parent=1 // pred_fallthru
      _
    // Predicated region
    $region6: #{dqn_forward.1} parent=1 // pred_check
      _
    $region7: #{dqn_forward.1} parent=1 // pred_check_branch
      %24 = sbr.rel (0) target = $region9
    $region8: #{dqn_forward.1} parent=1 // pred_region
      _
    $region9: #{dqn_forward.1} parent=1 // pred_fallthru
      _
    // Predicated region
    $region10: #{dqn_forward.1} parent=1 // pred_check
      _
    $region11: #{dqn_forward.1} parent=1 // pred_check_branch
      %26 = sbr.rel (0) target = $region13
    $region12: #{dqn_forward.1} parent=1 // pred_region
      _
    $region13: #{dqn_forward.1} parent=1 // pred_fallthru
      _
    // Predicated region
    $region14: #{dqn_forward.1} parent=1 // pred_check
      _
    $region15: #{dqn_forward.1} parent=1 // pred_check_branch
      %28 = sbr.rel (0) target = $region17
    $region16: #{dqn_forward.1} parent=1 // pred_region
      _
    $region17: #{dqn_forward.1} parent=1 // pred_fallthru
      _
    // Predicated region
    $region18: #{dqn_forward.1} parent=1 // pred_check
      _
    $region19: #{dqn_forward.1} parent=1 // pred_check_branch
      %30 = sbr.rel (0) target = $region21
    $region20: #{dqn_forward.1} parent=1 // pred_region
      _
    $region21: #{dqn_forward.1} parent=1 // pred_fallthru
      _
    // Predicated region
    $region22: #{dqn_forward.1} parent=1 // pred_check
      _
    $region23: #{dqn_forward.1} parent=1 // pred_check_branch
      %32 = sbr.rel (0) target = $region25
    $region24: #{dqn_forward.1} parent=1 // pred_region
      _
    $region25: #{dqn_forward.1} parent=1 // pred_fallthru
      _
    // Predicated region
    $region26: #{dqn_forward.1} parent=1 // pred_check
      _
    $region27: #{dqn_forward.1} parent=1 // pred_check_branch
      %34 = sbr.rel (0) target = $region29
    $region28: #{dqn_forward.1} parent=1 // pred_region
      _
    $region29: #{dqn_forward.1} parent=1 // pred_fallthru
      _
    // Predicated region
    $region30: #{dqn_forward.1} parent=1 // pred_check
      _
    $region31: #{dqn_forward.1} parent=1 // pred_check_branch
      %36 = sbr.rel (0) target = $region33
    $region32: #{dqn_forward.1} parent=1 // pred_region
      %37 = dma.done [#allocation3], 128
    $region33: #{dqn_forward.1} parent=1 // pred_fallthru
      _
    %v38 = vld [vmem:[#allocation2] sm:$0xff]
    %v39 = vld [vmem:[%s1] sm:$0xff]
    %v40 = vld [vmem:[%s1 + $0x8] sm:$0xff]
    %v41 = vld [vmem:[%s2] sm:$0x1]
    %v43 = vlaneseq
    %v44 = vshrl.u32 %v43, 7
    %v45 = vsub.s32 0, %v44
    %v46 = vrot.slane %v41, %v45
    %vm48 = vcmask 130048
    %v50 = vsel %vm48, %v38, 0
    %52 = vmatprep.subr.mxu0 0.0
    %53 = vmatpush1.msra.mxu0 %v39
    %54 = vmatprep.subr.mxu0 0.0
    %55 = vmatpush1.msra.mxu0 %v40
    %56 = vmatprep.subr.mxu0 0.0
    %57 = vmatpush1.msra.mxu0 0.0
    %58 = vmatprep.subr.mxu0 0.0
    %59 = vmatpush1.msra.mxu0 0.0
    %60 = vmatprep.subr.mxu0 0.0
    %61 = vmatpush1.msra.mxu0 0.0
    %62 = vmatprep.subr.mxu0 0.0
    %63 = vmatpush1.msra.mxu0 0.0
    %64 = vmatprep.subr.mxu0 0.0
    %65 = vmatpush1.msra.mxu0 0.0
    %66 = vmatprep.subr.mxu0 0.0
    %67 = vmatpush1.msra.mxu0 0.0
    %68 = vmatprep.subr.mxu0 0.0
    %69 = vmatpush1.msra.mxu0 0.0
    %70 = vmatprep.subr.mxu0 0.0
    %71 = vmatpush1.msra.mxu0 0.0
    %72 = vmatprep.subr.mxu0 0.0
    %73 = vmatpush1.msra.mxu0 0.0
    %74 = vmatprep.subr.mxu0 0.0
    %75 = vmatpush1.msra.mxu0 0.0
    %76 = vmatprep.subr.mxu0 0.0
    %77 = vmatpush1.msra.mxu0 0.0
    %78 = vmatprep.subr.mxu0 0.0
    %79 = vmatpush1.msra.mxu0 0.0
    %80 = vmatprep.subr.mxu0 0.0
    %81 = vmatpush1.msra.mxu0 0.0
    %82 = vmatprep.subr.mxu0 0.0
    %83 = vmatpush1.msra.mxu0 0.0
    %84 = vmatprep.subr.mxu0 0.0
    %85 = vmatpush1.msra.mxu0 0.0
    %86 = vmatprep.subr.mxu0 0.0
    %87 = vmatpush1.msra.mxu0 0.0
    %88 = vmatprep.subr.mxu0 0.0
    %89 = vmatpush1.msra.mxu0 0.0
    %90 = vmatprep.subr.mxu0 0.0
    %91 = vmatpush1.msra.mxu0 0.0
    %92 = vmatprep.subr.mxu0 0.0
    %93 = vmatpush1.msra.mxu0 0.0
    %94 = vmatprep.subr.mxu0 0.0
    %95 = vmatpush1.msra.mxu0 0.0
    %96 = vmatprep.subr.mxu0 0.0
    %97 = vmatpush1.msra.mxu0 0.0
    %98 = vmatprep.subr.mxu0 0.0
    %99 = vmatpush1.msra.mxu0 0.0
    %100 = vmatprep.subr.mxu0 0.0
    %101 = vmatpush1.msra.mxu0 0.0
    %102 = vmatprep.subr.mxu0 0.0
    %103 = vmatpush1.msra.mxu0 0.0
    %104 = vmatprep.subr.mxu0 0.0
    %105 = vmatpush1.msra.mxu0 0.0
    %106 = vmatprep.subr.mxu0 0.0
    %107 = vmatpush1.msra.mxu0 0.0
    %108 = vmatprep.subr.mxu0 0.0
    %109 = vmatpush1.msra.mxu0 0.0
    %110 = vmatprep.subr.mxu0 0.0
    %111 = vmatpush1.msra.mxu0 0.0
    %112 = vmatprep.subr.mxu0 0.0
    %113 = vmatpush1.msra.mxu0 0.0
    %114 = vmatprep.subr.mxu0 0.0
    %115 = vmatpush1.msra.mxu0 0.0
    %116 = vmatprep.mubr.f32.mxu0 0.0
    %117 = vmatmul.mubr.f32.gmra.mrb[0].mxu0 %v50
    %v118 = vpop.f32.mrb[0].mxu0
    %v119 = vadd.f32 %v46, %v118
    %v120 = vpop.f32.mrb[0].mxu0
    %121 = vdwg.mxu0
    %v122 = vmax.f32 %v119, 0.0
    %v123 = vld [vmem:[%s3] sm:$0xff]
    %v124 = vld [vmem:[%s3 + $0x8] sm:$0xff]
    %v125 = vld [vmem:[%s3 + $0x10] sm:$0xff]
    %v126 = vld [vmem:[%s3 + $0x18] sm:$0xff]
    %v127 = vld [vmem:[%s3 + $0x20] sm:$0xff]
    %v128 = vld [vmem:[%s3 + $0x28] sm:$0xff]
    %v129 = vld [vmem:[%s3 + $0x30] sm:$0xff]
    %v130 = vld [vmem:[%s3 + $0x38] sm:$0xff]
    %v131 = vld [vmem:[%s4] sm:$0x1]
    %v133 = vlaneseq
    %v134 = vshrl.u32 %v133, 7
    %v135 = vsub.s32 0, %v134
    %v136 = vrot.slane %v131, %v135
    %vm138 = vcmask 523264
    %v140 = vsel %vm138, %v122, 0
    %142 = vmatprep.subr.mxu0 0.0
    %143 = vmatpush1.msra.mxu0 %v123
    %144 = vmatprep.subr.mxu0 0.0
    %145 = vmatpush1.msra.mxu0 %v124
    %146 = vmatprep.subr.mxu0 0.0
    %147 = vmatpush1.msra.mxu0 %v125
    %148 = vmatprep.subr.mxu0 0.0
    %149 = vmatpush1.msra.mxu0 %v126
    %150 = vmatprep.subr.mxu0 0.0
    %151 = vmatpush1.msra.mxu0 %v127
    %152 = vmatprep.subr.mxu0 0.0
    %153 = vmatpush1.msra.mxu0 %v128
    %154 = vmatprep.subr.mxu0 0.0
    %155 = vmatpush1.msra.mxu0 %v129
    %156 = vmatprep.subr.mxu0 0.0
    %157 = vmatpush1.msra.mxu0 %v130
    %158 = vmatprep.subr.mxu0 0.0
    %159 = vmatpush1.msra.mxu0 0.0
    %160 = vmatprep.subr.mxu0 0.0
    %161 = vmatpush1.msra.mxu0 0.0
    %162 = vmatprep.subr.mxu0 0.0
    %163 = vmatpush1.msra.mxu0 0.0
    %164 = vmatprep.subr.mxu0 0.0
    %165 = vmatpush1.msra.mxu0 0.0
    %166 = vmatprep.subr.mxu0 0.0
    %167 = vmatpush1.msra.mxu0 0.0
    %168 = vmatprep.subr.mxu0 0.0
    %169 = vmatpush1.msra.mxu0 0.0
    %170 = vmatprep.subr.mxu0 0.0
    %171 = vmatpush1.msra.mxu0 0.0
    %172 = vmatprep.subr.mxu0 0.0
    %173 = vmatpush1.msra.mxu0 0.0
    %174 = vmatprep.subr.mxu0 0.0
    %175 = vmatpush1.msra.mxu0 0.0
    %176 = vmatprep.subr.mxu0 0.0
    %177 = vmatpush1.msra.mxu0 0.0
    %178 = vmatprep.subr.mxu0 0.0
    %179 = vmatpush1.msra.mxu0 0.0
    %180 = vmatprep.subr.mxu0 0.0
    %181 = vmatpush1.msra.mxu0 0.0
    %182 = vmatprep.subr.mxu0 0.0
    %183 = vmatpush1.msra.mxu0 0.0
    %184 = vmatprep.subr.mxu0 0.0
    %185 = vmatpush1.msra.mxu0 0.0
    %186 = vmatprep.subr.mxu0 0.0
    %187 = vmatpush1.msra.mxu0 0.0
    %188 = vmatprep.subr.mxu0 0.0
    %189 = vmatpush1.msra.mxu0 0.0
    %190 = vmatprep.subr.mxu0 0.0
    %191 = vmatpush1.msra.mxu0 0.0
    %192 = vmatprep.subr.mxu0 0.0
    %193 = vmatpush1.msra.mxu0 0.0
    %194 = vmatprep.subr.mxu0 0.0
    %195 = vmatpush1.msra.mxu0 0.0
    %196 = vmatprep.subr.mxu0 0.0
    %197 = vmatpush1.msra.mxu0 0.0
    %198 = vmatprep.subr.mxu0 0.0
    %199 = vmatpush1.msra.mxu0 0.0
    %200 = vmatprep.subr.mxu0 0.0
    %201 = vmatpush1.msra.mxu0 0.0
    %202 = vmatprep.subr.mxu0 0.0
    %203 = vmatpush1.msra.mxu0 0.0
    %204 = vmatprep.subr.mxu0 0.0
    %205 = vmatpush1.msra.mxu0 0.0
    %206 = vmatprep.mubr.f32.mxu0 0.0
    %207 = vmatmul.mubr.f32.gmra.mrb[0].mxu0 %v140
    %v208 = vpop.f32.mrb[0].mxu0
    %v209 = vadd.f32 %v136, %v208
    %v210 = vpop.f32.mrb[0].mxu0
    %211 = vdwg.mxu0
    %v212 = vmax.f32 %v209, 0.0
    %v213 = vld [vmem:[%s5] sm:$0xff]
    %v214 = vld [vmem:[%s5 + $0x8] sm:$0xff]
    %v215 = vld [vmem:[%s5 + $0x10] sm:$0xff]
    %v216 = vld [vmem:[%s5 + $0x18] sm:$0xff]
    %v217 = vld [vmem:[%s5 + $0x20] sm:$0xff]
    %v218 = vld [vmem:[%s5 + $0x28] sm:$0xff]
    %v219 = vld [vmem:[%s5 + $0x30] sm:$0xff]
    %v220 = vld [vmem:[%s5 + $0x38] sm:$0xff]
    %v221 = vld [vmem:[%s6] sm:$0x1]
    %v223 = vlaneseq
    %v224 = vshrl.u32 %v223, 7
    %v225 = vsub.s32 0, %v224
    %v226 = vrot.slane %v221, %v225
    %v229 = vsel %vm138, %v212, 0
    %231 = vmatprep.subr.mxu0 0.0
    %232 = vmatpush1.msra.mxu0 %v213
    %233 = vmatprep.subr.mxu0 0.0
    %234 = vmatpush1.msra.mxu0 %v214
    %235 = vmatprep.subr.mxu0 0.0
    %236 = vmatpush1.msra.mxu0 %v215
    %237 = vmatprep.subr.mxu0 0.0
    %238 = vmatpush1.msra.mxu0 %v216
    %239 = vmatprep.subr.mxu0 0.0
    %240 = vmatpush1.msra.mxu0 %v217
    %241 = vmatprep.subr.mxu0 0.0
    %242 = vmatpush1.msra.mxu0 %v218
    %243 = vmatprep.subr.mxu0 0.0
    %244 = vmatpush1.msra.mxu0 %v219
    %245 = vmatprep.subr.mxu0 0.0
    %246 = vmatpush1.msra.mxu0 %v220
    %247 = vmatprep.subr.mxu0 0.0
    %248 = vmatpush1.msra.mxu0 0.0
    %249 = vmatprep.subr.mxu0 0.0
    %250 = vmatpush1.msra.mxu0 0.0
    %251 = vmatprep.subr.mxu0 0.0
    %252 = vmatpush1.msra.mxu0 0.0
    %253 = vmatprep.subr.mxu0 0.0
    %254 = vmatpush1.msra.mxu0 0.0
    %255 = vmatprep.subr.mxu0 0.0
    %256 = vmatpush1.msra.mxu0 0.0
    %257 = vmatprep.subr.mxu0 0.0
    %258 = vmatpush1.msra.mxu0 0.0
    %259 = vmatprep.subr.mxu0 0.0
    %260 = vmatpush1.msra.mxu0 0.0
    %261 = vmatprep.subr.mxu0 0.0
    %262 = vmatpush1.msra.mxu0 0.0
    %263 = vmatprep.subr.mxu0 0.0
    %264 = vmatpush1.msra.mxu0 0.0
    %265 = vmatprep.subr.mxu0 0.0
    %266 = vmatpush1.msra.mxu0 0.0
    %267 = vmatprep.subr.mxu0 0.0
    %268 = vmatpush1.msra.mxu0 0.0
    %269 = vmatprep.subr.mxu0 0.0
    %270 = vmatpush1.msra.mxu0 0.0
    %271 = vmatprep.subr.mxu0 0.0
    %272 = vmatpush1.msra.mxu0 0.0
    %273 = vmatprep.subr.mxu0 0.0
    %274 = vmatpush1.msra.mxu0 0.0
    %275 = vmatprep.subr.mxu0 0.0
    %276 = vmatpush1.msra.mxu0 0.0
    %277 = vmatprep.subr.mxu0 0.0
    %278 = vmatpush1.msra.mxu0 0.0
    %279 = vmatprep.subr.mxu0 0.0
    %280 = vmatpush1.msra.mxu0 0.0
    %281 = vmatprep.subr.mxu0 0.0
    %282 = vmatpush1.msra.mxu0 0.0
    %283 = vmatprep.subr.mxu0 0.0
    %284 = vmatpush1.msra.mxu0 0.0
    %285 = vmatprep.subr.mxu0 0.0
    %286 = vmatpush1.msra.mxu0 0.0
    %287 = vmatprep.subr.mxu0 0.0
    %288 = vmatpush1.msra.mxu0 0.0
    %289 = vmatprep.subr.mxu0 0.0
    %290 = vmatpush1.msra.mxu0 0.0
    %291 = vmatprep.subr.mxu0 0.0
    %292 = vmatpush1.msra.mxu0 0.0
    %293 = vmatprep.subr.mxu0 0.0
    %294 = vmatpush1.msra.mxu0 0.0
    %295 = vmatprep.mubr.f32.mxu0 0.0
    %296 = vmatmul.mubr.f32.gmra.mrb[0].mxu0 %v229
    %v297 = vpop.f32.mrb[0].mxu0
    %v298 = vadd.f32 %v226, %v297
    %v299 = vpop.f32.mrb[0].mxu0
    %300 = vdwg.mxu0
    %v301 = vmax.f32 %v298, 0.0
    %vm302 = vcmask 31744
    %303 = vst.msk [vmem:[%s7] sm:$0xff] %vm302, %v301
    // Predicated region
    $region34: #{dqn_forward.1} parent=1 // pred_check
      _
    $region35: #{dqn_forward.1} parent=1 // pred_check_branch
      %305 = sbr.rel (0) target = $region37
    $region36: #{dqn_forward.1} parent=1 // pred_region
      _
    $region37: #{dqn_forward.1} parent=1 // pred_fallthru
      _
    // Predicated region
    $region38: #{dqn_forward.1} parent=1 // pred_check
      _
    $region39: #{dqn_forward.1} parent=1 // pred_check_branch
      %307 = sbr.rel (0) target = $region41
    $region40: #{dqn_forward.1} parent=1 // pred_region
      _
    $region41: #{dqn_forward.1} parent=1 // pred_fallthru
      _
    %308 = vsyncpa [#allocation3], 1

</llo_original>
